<compile_context>
chip_gen: v7x
topology: tpu7x:2x2x1
jax: 0.10.0
libtpu: 0.0.40
codegen_flags: <defaults>
</compile_context>

<pallas_src>
import functools

import jax
import jax.numpy as jnp
from jax.experimental import pallas as pl
from jax.experimental.pallas import tpu as pltpu

STAT_LANES = 128                     # lane width of the per-batch stats block
_TARGET_BLOCK_BYTES = 1024 * 1024    # ~1 MiB of (f32-equivalent) logits per step


def _edge_loss_kernel(logits_ref, tgt_ref, out_ref, *, num_classes, ignore_index):
    """Grid = (batch, pixel_tile).  Per batch, accumulates into a resident
    (C, 128) output block:
        out[c, 0]  per-class intersection   sum(prob * onehot)        (valid pixels)
        out[c, 1]  per-class cardinality    sum(prob) + sum(onehot)   (valid pixels)
        out[c, 2]  per-class target count   sum(onehot)               (valid pixels)
        out[0, 3]  sum of NLL terms                                   (valid pixels)
        out[0, 4]  sum of smoothing terms (-sum_c logprob)            (valid pixels)
    """
    c = num_classes

    @pl.when(pl.program_id(1) == 0)
    def _():
        out_ref[...] = jnp.zeros_like(out_ref)

    x = logits_ref[...].astype(jnp.float32)        # (C, TL): classes on sublanes
    tgt = tgt_ref[...]                             # (1, TL): pixels on lanes

    valid = tgt != ignore_index                    # (1, TL)
    validf = valid.astype(jnp.float32)

    # log-softmax / softmax over the class (sublane) axis -- no class padding.
    m = jnp.max(x, axis=0, keepdims=True)          # (1, TL)   XLU
    e = jnp.exp(x - m)                             # (C, TL)   EUP
    s = jnp.sum(e, axis=0, keepdims=True)          # (1, TL)   XLU
    inv_s = pl.reciprocal(s)                       # exact recip (EUP slot) + mul
    logz = m + jnp.log(s)                          # (1, TL)
    prob = e * inv_s                               # (C, TL)

    # One-hot of the target on the class/sublane axis; ignored pixels -> all-zero
    # rows (the AND with `valid` also covers an ignore_index inside [0, C)).
    cls = jax.lax.broadcasted_iota(jnp.int32, x.shape, 0)
    onehot = jnp.where(jnp.logical_and(cls == tgt, valid), 1.0, 0.0)   # (C, TL)

    # Soft-CE pieces without materializing the full logprob array:
    #   nll_pp    = -sum_c logprob*onehot   = logz*valid - x[target]
    #   smooth_pp = -(sum_c logprob)*valid  = (C*logz - sum_c x)*valid
    x_tgt = jnp.sum(x * onehot, axis=0, keepdims=True)        # (1, TL)
    colsum_x = jnp.sum(x, axis=0, keepdims=True)               # (1, TL)
    # NOTE: single f32 accumulators across tiles; fine at 1e-4 tol for typical
    # image sizes (per-tile sums are already tree reductions).
    nll_sum = jnp.sum(logz * validf - x_tgt)                   # scalar
    smooth_sum = jnp.sum((c * logz - colsum_x) * validf)       # scalar

    # Dice pieces: per-class reductions over the lane (pixel) axis.
    inter = jnp.sum(prob * onehot, axis=1, keepdims=True)      # (C, 1)
    ppred = jnp.sum(prob * validf, axis=1, keepdims=True)      # (C, 1)
    tcount = jnp.sum(onehot, axis=1, keepdims=True)            # (C, 1)
    card = ppred + tcount                                      # (C, 1)

    # Pack everything into ONE lane-dense (C, 128) tile and do a single
    # full-tile accumulate (no per-row masked partial stores).
    lane = jax.lax.broadcasted_iota(jnp.int32, out_ref.shape, 1)
    row = jax.lax.broadcasted_iota(jnp.int32, out_ref.shape, 0)
    stats = (jnp.where(lane == 0, inter, 0.0)
             + jnp.where(lane == 1, card, 0.0)
             + jnp.where(lane == 2, tcount, 0.0)
             + jnp.where(jnp.logical_and(row == 0, lane == 3), nll_sum, 0.0)
             + jnp.where(jnp.logical_and(row == 0, lane == 4), smooth_sum, 0.0))
    out_ref[...] += stats


def edge_loss(logits, targets, *, ignore_index=255, smooth_factor=0.05,
              dice_smooth=0.05, eps=1e-7):
    """EdgeLoss.forward: SoftCrossEntropyLoss(0.05, ignore) + DiceLoss(0.05, ignore)."""
    n, c, h, w = logits.shape
    hw = h * w
    p = n * hw

    # Class-on-sublane / pixel-on-lane layout: NCHW only needs a (free) reshape.
    x = logits.reshape(n, c, hw)                       # keep native dtype (f32/bf16)
    t = targets.reshape(n, 1, hw).astype(jnp.int32)

    # Pixel (lane) tile size: ~1 MiB of f32-equivalent logits per grid step,
    # multiple of 128 lanes, never larger than the (128-padded) spatial extent.
    tl_cap = max(128, (_TARGET_BLOCK_BYTES // (4 * c)) // 128 * 128)
    hw_lanes = -(-hw // 128) * 128
    tl = min(tl_cap, hw_lanes)
    hw_pad = -(-hw // tl) * tl
    if hw_pad != hw:
        x = jnp.pad(x, ((0, 0), (0, 0), (0, hw_pad - hw)))
        t = jnp.pad(t, ((0, 0), (0, 0), (0, hw_pad - hw)),
                    constant_values=ignore_index)
    num_tiles = hw_pad // tl

    kernel = functools.partial(_edge_loss_kernel, num_classes=c,
                               ignore_index=ignore_index)

    cost = pl.CostEstimate(
        flops=int(12 * n * c * hw_pad),
        transcendentals=int(n * hw_pad * (c + 2)),        # exp per class + log + recip
        bytes_accessed=int(x.size * x.dtype.itemsize + t.size * 4
                           + n * c * STAT_LANES * 4),
    )

    stats = pl.pallas_call(
        kernel,
        out_shape=jax.ShapeDtypeStruct((n, c, STAT_LANES), jnp.float32),
        grid_spec=pltpu.PrefetchScalarGridSpec(
            num_scalar_prefetch=0,
            grid=(n, num_tiles),
            in_specs=[
                pl.BlockSpec((pl.Squeezed(), c, tl), lambda b, i: (b, 0, i)),
                pl.BlockSpec((pl.Squeezed(), 1, tl), lambda b, i: (b, 0, i)),
            ],
            out_specs=pl.BlockSpec((pl.Squeezed(), c, STAT_LANES),
                                   lambda b, i: (b, 0, 0)),
        ),
        compiler_params=pltpu.CompilerParams(
            dimension_semantics=("parallel", "arbitrary")),
        cost_estimate=cost,
    )(x, t)

    stats = jnp.sum(stats, axis=0)          # (C, 128): combine per-batch partials
    inter = stats[:, 0]
    card = stats[:, 1]
    tcount = stats[:, 2]
    nll_sum = stats[0, 3]
    smooth_sum = stats[0, 4]

    # SoftCrossEntropyLoss: mean over ALL pixels (ignored pixels contribute 0).
    ce = ((1.0 - smooth_factor) * nll_sum + (smooth_factor / c) * smooth_sum) / p

    # DiceLoss (multiclass, from logits), reduced over (batch, spatial) per class.
    dice_score = (2.0 * inter + dice_smooth) / jnp.maximum(card + dice_smooth, eps)
    dice = jnp.mean((1.0 - dice_score) * (tcount > 0).astype(jnp.float32))

    return ce + dice


def edge_loss_reference(logits, targets, *, ignore_index=255, smooth_factor=0.05,
                        dice_smooth=0.05, eps=1e-7):
    """Pure-JAX reference mirroring the PyTorch SoftCE + Dice semantics."""
    n, c, h, w = logits.shape
    lp = jax.nn.log_softmax(logits.astype(jnp.float32), axis=1)         # N,C,H,W
    valid = targets != ignore_index                                      # N,H,W
    tgt_safe = jnp.where(valid, targets, 0)
    onehot = jax.nn.one_hot(tgt_safe, c, axis=1, dtype=jnp.float32)      # N,C,H,W
    validf = valid.astype(jnp.float32)

    nll = -jnp.sum(lp * onehot, axis=1) * validf
    smooth = -jnp.sum(lp, axis=1) * validf
    ce = (1.0 - smooth_factor) * jnp.mean(nll) + (smooth_factor / c) * jnp.mean(smooth)

    prob = jnp.exp(lp)
    yp = prob * validf[:, None]
    yt = onehot * validf[:, None]
    dims = (0, 2, 3)
    inter = jnp.sum(yp * yt, axis=dims)
    card = jnp.sum(yp + yt, axis=dims)
    score = (2.0 * inter + dice_smooth) / jnp.maximum(card + dice_smooth, eps)
    dice = jnp.mean((1.0 - score) * (jnp.sum(yt, axis=dims) > 0).astype(jnp.float32))
    return ce + dice


if __name__ == "__main__":
    key = jax.random.PRNGKey(0)
    k1, k2, k3, k4, k5, k6 = jax.random.split(key, 6)

    # Case 1: small, lane-aligned spatial extent (16*16 = 256 pixels).
    N, C, H, W = 2, 4, 16, 16
    logits = jax.random.normal(k1, (N, C, H, W), dtype=jnp.float32)
    targets = jax.random.randint(k2, (N, H, W), 0, C, dtype=jnp.int32)
    ignore_mask = jax.random.uniform(k3, (N, H, W)) < 0.1   # exercise masking
    targets = jnp.where(ignore_mask, 255, targets)

    loss = jax.block_until_ready(edge_loss(logits, targets))
    ref = jax.block_until_ready(edge_loss_reference(logits, targets))
    assert jnp.allclose(loss, ref, rtol=1e-4, atol=1e-4), (loss, ref)

    # Case 2: non-128-multiple spatial extent (17*17 = 289) to exercise padding.
    N2, C2, H2, W2 = 2, 4, 17, 17
    logits2 = jax.random.normal(k4, (N2, C2, H2, W2), dtype=jnp.float32)
    targets2 = jax.random.randint(k5, (N2, H2, W2), 0, C2, dtype=jnp.int32)
    ignore_mask2 = jax.random.uniform(k6, (N2, H2, W2)) < 0.1
    targets2 = jnp.where(ignore_mask2, 255, targets2)

    loss2 = jax.block_until_ready(edge_loss(logits2, targets2))
    ref2 = jax.block_until_ready(edge_loss_reference(logits2, targets2))
    assert jnp.allclose(loss2, ref2, rtol=1e-4, atol=1e-4), (loss2, ref2)

    print("KERNEL_OK")
</pallas_src>

<mosaic_0001>
module attributes {stable_mosaic.version = 11 : i64} {
  func.func @_edge_loss_kernel(%arg0: i32, %arg1: i32, %arg2: memref<1x4x256xf32, #tpu.memory_space<vmem>>, %arg3: memref<1x1x256xi32, #tpu.memory_space<vmem>>, %arg4: memref<1x4x128xf32, #tpu.memory_space<vmem>>) attributes {dimension_semantics = [#tpu.dimension_semantics<parallel>, #tpu.dimension_semantics<arbitrary>], iteration_bounds = array<i64: 2, 1>, scalar_prefetch = 0 : i64, scratch_operands = 0 : i64, tpu.core_type = #tpu.core_type<tc>, window_params = [{transform_indices = @transform_0, window_bounds = array<i64: 1, 4, 256>}, {transform_indices = @transform_1, window_bounds = array<i64: 1, 1, 256>}, {transform_indices = @transform_2, window_bounds = array<i64: 1, 4, 128>}]} {
    %c0_i32 = arith.constant 0 : i32
    %0 = arith.cmpi eq, %arg1, %c0_i32 : i32
    %1 = arith.extui %0 : i1 to i32
    %c0_i32_0 = arith.constant 0 : i32
    %2 = arith.cmpi ne, %1, %c0_i32_0 : i32
    scf.if %2 {
      %cst_31 = arith.constant 0.000000e+00 : f32
      %106 = vector.broadcast %cst_31 : f32 to vector<4x128xf32>
      %c0_32 = arith.constant 0 : index
      %c0_33 = arith.constant 0 : index
      %c0_34 = arith.constant 0 : index
      %107 = vector.load %arg4[%c0_32, %c0_33, %c0_34] : memref<1x4x128xf32, #tpu.memory_space<vmem>>, vector<1x4x128xf32>
      %108 = vector.shape_cast %107 : vector<1x4x128xf32> to vector<4x128xf32>
      %109 = vector.shape_cast %106 : vector<4x128xf32> to vector<1x4x128xf32>
      tpu.vector_store %arg4[%c0_32, %c0_33, %c0_34], %109 {strides = array<i32>} : memref<1x4x128xf32, #tpu.memory_space<vmem>>, vector<1x4x128xf32>,
    } else {
    }
    %c0 = arith.constant 0 : index
    %c0_1 = arith.constant 0 : index
    %c0_2 = arith.constant 0 : index
    %3 = vector.load %arg2[%c0, %c0_1, %c0_2] : memref<1x4x256xf32, #tpu.memory_space<vmem>>, vector<1x4x256xf32>
    %4 = vector.shape_cast %3 : vector<1x4x256xf32> to vector<4x256xf32>
    %c0_3 = arith.constant 0 : index
    %c0_4 = arith.constant 0 : index
    %c0_5 = arith.constant 0 : index
    %5 = vector.load %arg3[%c0_3, %c0_4, %c0_5] : memref<1x1x256xi32, #tpu.memory_space<vmem>>, vector<1x1x256xi32>
    %6 = vector.shape_cast %5 : vector<1x1x256xi32> to vector<1x256xi32>
    %c255_i32 = arith.constant 255 : i32
    %7 = vector.broadcast %c255_i32 : i32 to vector<1x256xi32>
    %8 = arith.cmpi ne, %6, %7 : vector<1x256xi32>
    %9 = arith.extui %8 : vector<1x256xi1> to vector<1x256xi32>
    %10 = arith.sitofp %9 : vector<1x256xi32> to vector<1x256xf32>
    %cst = arith.constant dense<0xFF800000> : vector<256xf32>
    %11 = vector.multi_reduction <maximumf>, %4, %cst [0] : vector<4x256xf32> to vector<256xf32>
    %12 = vector.shape_cast %11 : vector<256xf32> to vector<1x256xf32>
    %13 = vector.broadcast %12 : vector<1x256xf32> to vector<4x256xf32>
    %14 = arith.subf %4, %13 : vector<4x256xf32>
    %15 = math.exp %14 : vector<4x256xf32>
    %cst_6 = arith.constant dense<0.000000e+00> : vector<256xf32>
    %16 = vector.multi_reduction <add>, %15, %cst_6 [0] : vector<4x256xf32> to vector<256xf32>
    %17 = vector.shape_cast %16 : vector<256xf32> to vector<1x256xf32>
    %18 = tpu.reciprocal %17 : vector<1x256xf32> -> vector<1x256xf32>
    %19 = math.log %17 : vector<1x256xf32>
    %20 = arith.addf %12, %19 : vector<1x256xf32>
    %21 = vector.broadcast %18 : vector<1x256xf32> to vector<4x256xf32>
    %22 = arith.mulf %15, %21 : vector<4x256xf32>
    %23 = tpu.iota {dimensions = array<i32: 0>} : vector<4x256xi32>
    %24 = vector.broadcast %6 : vector<1x256xi32> to vector<4x256xi32>
    %25 = arith.cmpi eq, %23, %24 : vector<4x256xi32>
    %26 = vector.broadcast %8 : vector<1x256xi1> to vector<4x256xi1>
    %27 = arith.andi %25, %26 : vector<4x256xi1>
    %cst_7 = arith.constant 1.000000e+00 : f32
    %cst_8 = arith.constant 0.000000e+00 : f32
    %28 = vector.broadcast %cst_7 : f32 to vector<4x256xf32>
    %29 = vector.broadcast %cst_8 : f32 to vector<4x256xf32>
    %30 = arith.select %27, %28, %29 : vector<4x256xi1>, vector<4x256xf32>
    %31 = arith.mulf %4, %30 : vector<4x256xf32>
    %cst_9 = arith.constant dense<0.000000e+00> : vector<256xf32>
    %32 = vector.multi_reduction <add>, %31, %cst_9 [0] : vector<4x256xf32> to vector<256xf32>
    %33 = vector.shape_cast %32 : vector<256xf32> to vector<1x256xf32>
    %cst_10 = arith.constant dense<0.000000e+00> : vector<256xf32>
    %34 = vector.multi_reduction <add>, %4, %cst_10 [0] : vector<4x256xf32> to vector<256xf32>
    %35 = vector.shape_cast %34 : vector<256xf32> to vector<1x256xf32>
    %36 = arith.mulf %20, %10 : vector<1x256xf32>
    %37 = arith.subf %36, %33 : vector<1x256xf32>
    %38 = vector.shape_cast %37 : vector<1x256xf32> to vector<1x1x256xf32>
    %cst_11 = arith.constant dense<0.000000e+00> : vector<1xf32>
    %39 = vector.multi_reduction <add>, %38, %cst_11 [1, 2] : vector<1x1x256xf32> to vector<1xf32>
    %40 = vector.shape_cast %39 : vector<1xf32> to vector<1x1x1xf32>
    %41 = vector.extract %40[0, 0, 0] : f32 from vector<1x1x1xf32>
    %cst_12 = arith.constant 4.000000e+00 : f32
    %42 = vector.broadcast %cst_12 : f32 to vector<1x256xf32>
    %43 = arith.mulf %42, %20 : vector<1x256xf32>
    %44 = arith.subf %43, %35 : vector<1x256xf32>
    %45 = arith.mulf %44, %10 : vector<1x256xf32>
    %46 = vector.shape_cast %45 : vector<1x256xf32> to vector<1x1x256xf32>
    %cst_13 = arith.constant dense<0.000000e+00> : vector<1xf32>
    %47 = vector.multi_reduction <add>, %46, %cst_13 [1, 2] : vector<1x1x256xf32> to vector<1xf32>
    %48 = vector.shape_cast %47 : vector<1xf32> to vector<1x1x1xf32>
    %49 = vector.extract %48[0, 0, 0] : f32 from vector<1x1x1xf32>
    %50 = arith.mulf %22, %30 : vector<4x256xf32>
    %cst_14 = arith.constant dense<0.000000e+00> : vector<4xf32>
    %51 = vector.multi_reduction <add>, %50, %cst_14 [1] : vector<4x256xf32> to vector<4xf32>
    %52 = vector.shape_cast %51 : vector<4xf32> to vector<4x1xf32>
    %53 = vector.broadcast %10 : vector<1x256xf32> to vector<4x256xf32>
    %54 = arith.mulf %22, %53 : vector<4x256xf32>
    %cst_15 = arith.constant dense<0.000000e+00> : vector<4xf32>
    %55 = vector.multi_reduction <add>, %54, %cst_15 [1] : vector<4x256xf32> to vector<4xf32>
    %56 = vector.shape_cast %55 : vector<4xf32> to vector<4x1xf32>
    %cst_16 = arith.constant dense<0.000000e+00> : vector<4xf32>
    %57 = vector.multi_reduction <add>, %30, %cst_16 [1] : vector<4x256xf32> to vector<4xf32>
    %58 = vector.shape_cast %57 : vector<4xf32> to vector<4x1xf32>
    %59 = arith.addf %56, %58 : vector<4x1xf32>
    %60 = tpu.iota {dimensions = array<i32: 1>} : vector<4x128xi32>
    %61 = tpu.iota {dimensions = array<i32: 0>} : vector<4x128xi32>
    %c0_i32_17 = arith.constant 0 : i32
    %62 = vector.broadcast %c0_i32_17 : i32 to vector<4x128xi32>
    %63 = arith.cmpi eq, %60, %62 : vector<4x128xi32>
    %cst_18 = arith.constant 0.000000e+00 : f32
    %64 = vector.shape_cast %52 : vector<4x1xf32> to vector<4x1xf32>
    %65 = vector.broadcast %64 : vector<4x1xf32> to vector<4x128xf32>
    %66 = vector.broadcast %cst_18 : f32 to vector<4x128xf32>
    %67 = arith.select %63, %65, %66 : vector<4x128xi1>, vector<4x128xf32>
    %c1_i32 = arith.constant 1 : i32
    %68 = vector.broadcast %c1_i32 : i32 to vector<4x128xi32>
    %69 = arith.cmpi eq, %60, %68 : vector<4x128xi32>
    %cst_19 = arith.constant 0.000000e+00 : f32
    %70 = vector.shape_cast %59 : vector<4x1xf32> to vector<4x1xf32>
    %71 = vector.broadcast %70 : vector<4x1xf32> to vector<4x128xf32>
    %72 = vector.broadcast %cst_19 : f32 to vector<4x128xf32>
    %73 = arith.select %69, %71, %72 : vector<4x128xi1>, vector<4x128xf32>
    %74 = arith.addf %67, %73 : vector<4x128xf32>
    %c2_i32 = arith.constant 2 : i32
    %75 = vector.broadcast %c2_i32 : i32 to vector<4x128xi32>
    %76 = arith.cmpi eq, %60, %75 : vector<4x128xi32>
    %cst_20 = arith.constant 0.000000e+00 : f32
    %77 = vector.shape_cast %58 : vector<4x1xf32> to vector<4x1xf32>
    %78 = vector.broadcast %77 : vector<4x1xf32> to vector<4x128xf32>
    %79 = vector.broadcast %cst_20 : f32 to vector<4x128xf32>
    %80 = arith.select %76, %78, %79 : vector<4x128xi1>, vector<4x128xf32>
    %81 = arith.addf %74, %80 : vector<4x128xf32>
    %c0_i32_21 = arith.constant 0 : i32
    %82 = vector.broadcast %c0_i32_21 : i32 to vector<4x128xi32>
    %83 = arith.cmpi eq, %61, %82 : vector<4x128xi32>
    %c3_i32 = arith.constant 3 : i32
    %84 = vector.broadcast %c3_i32 : i32 to vector<4x128xi32>
    %85 = arith.cmpi eq, %60, %84 : vector<4x128xi32>
    %86 = arith.andi %83, %85 : vector<4x128xi1>
    %cst_22 = arith.constant 0.000000e+00 : f32
    %87 = vector.broadcast %41 : f32 to vector<4x128xf32>
    %88 = vector.broadcast %cst_22 : f32 to vector<4x128xf32>
    %89 = arith.select %86, %87, %88 : vector<4x128xi1>, vector<4x128xf32>
    %90 = arith.addf %81, %89 : vector<4x128xf32>
    %c0_i32_23 = arith.constant 0 : i32
    %91 = vector.broadcast %c0_i32_23 : i32 to vector<4x128xi32>
    %92 = arith.cmpi eq, %61, %91 : vector<4x128xi32>
    %c4_i32 = arith.constant 4 : i32
    %93 = vector.broadcast %c4_i32 : i32 to vector<4x128xi32>
    %94 = arith.cmpi eq, %60, %93 : vector<4x128xi32>
    %95 = arith.andi %92, %94 : vector<4x128xi1>
    %cst_24 = arith.constant 0.000000e+00 : f32
    %96 = vector.broadcast %49 : f32 to vector<4x128xf32>
    %97 = vector.broadcast %cst_24 : f32 to vector<4x128xf32>
    %98 = arith.select %95, %96, %97 : vector<4x128xi1>, vector<4x128xf32>
    %99 = arith.addf %90, %98 : vector<4x128xf32>
    %c0_25 = arith.constant 0 : index
    %c0_26 = arith.constant 0 : index
    %c0_27 = arith.constant 0 : index
    %100 = vector.load %arg4[%c0_25, %c0_26, %c0_27] : memref<1x4x128xf32, #tpu.memory_space<vmem>>, vector<1x4x128xf32>
    %101 = vector.shape_cast %100 : vector<1x4x128xf32> to vector<4x128xf32>
    %102 = arith.addf %101, %99 : vector<4x128xf32>
    %c0_28 = arith.constant 0 : index
    %c0_29 = arith.constant 0 : index
    %c0_30 = arith.constant 0 : index
    %103 = vector.load %arg4[%c0_28, %c0_29, %c0_30] : memref<1x4x128xf32, #tpu.memory_space<vmem>>, vector<1x4x128xf32>
    %104 = vector.shape_cast %103 : vector<1x4x128xf32> to vector<4x128xf32>
    %105 = vector.shape_cast %102 : vector<4x128xf32> to vector<1x4x128xf32>
    tpu.vector_store %arg4[%c0_28, %c0_29, %c0_30], %105 {strides = array<i32>} : memref<1x4x128xf32, #tpu.memory_space<vmem>>, vector<1x4x128xf32>,
    return
  }
  func.func @transform_0(%arg0: i32, %arg1: i32) -> (i32, i32, i32) {
    %c0_i32 = arith.constant 0 : i32
    %c0_i32_0 = arith.constant 0 : i32
    return %arg0, %c0_i32, %arg1 : i32, i32, i32
  }
  func.func @transform_1(%arg0: i32, %arg1: i32) -> (i32, i32, i32) {
    %c0_i32 = arith.constant 0 : i32
    %c0_i32_0 = arith.constant 0 : i32
    return %arg0, %c0_i32, %arg1 : i32, i32, i32
  }
  func.func @transform_2(%arg0: i32, %arg1: i32) -> (i32, i32, i32) {
    %c0_i32 = arith.constant 0 : i32
    %c0_i32_0 = arith.constant 0 : i32
    %c0_i32_1 = arith.constant 0 : i32
    return %arg0, %c0_i32, %c0_i32_0 : i32, i32, i32
  }
}

</mosaic_0001>

<llo_original>
// kernel: tpu_custom_call.1
$region0: #{tpu_custom_call.1}
  #allocation0 [shape = 'u32[]', space=smem, size = 0x4, offset = 0x4, fixed_abs, tag = 'smem constant byte address 0x4 - core index']
  #allocation1 [shape = 'u32[144,128]{1,0:T(1,128)}', space=vmem, size = 0x12000, scoped, tag = 'internal scratch']
  %s0 = inlined_call_operand.hbm [shape: f32[2,4,256], index: 0, kind: input, shape index: {}]
  %s1 = inlined_call_operand.hbm [shape: s32[2,1,256], index: 1, kind: input, shape index: {}]
  %s2 = inlined_call_operand.hbm [shape: f32[2,4,128], index: 2, kind: output, shape index: {}]
  %s3 = sld [smem:[#allocation0]]
  $region53: #{tpu_custom_call.1} parent=0
    _
  %s5 = ssub.s32 1, %s3
  %s6 = scalar_select 0, %s5, %s3
  $region1: #{tpu_custom_call.1} parent=0
    #allocation2 [shape = 'u8[8192]{0}', space=vmem, size = 0x2000, scoped, tag = 'input window, operand 0']
    #allocation3 [shape = 's32[2]{0}', space=sflag, size = 0x8, scoped, tag = 'scoped memory for tpu_custom_call.1']
    #allocation4 [shape = 's32[2]{0}', space=sflag, size = 0x8, scoped, tag = 'scoped memory for tpu_custom_call.1']
    #allocation5 [shape = 'u8[2048]{0}', space=vmem, size = 0x800, scoped, tag = 'input window, operand 1']
    #allocation6 [shape = 's32[2]{0}', space=sflag, size = 0x8, scoped, tag = 'scoped memory for tpu_custom_call.1']
    #allocation7 [shape = 'u8[4096]{0}', space=vmem, size = 0x1000, scoped, tag = 'output window, operand 0']
    %7 = vsyncpa [#allocation3], 0
    %s8 = scalar_lea.sflag [#allocation3], 1
    %9 = vsyncpa %s8, 0
    %10 = vsyncpa [#allocation6], 0
    %s11 = scalar_lea.sflag [#allocation6], 1
    %12 = vsyncpa %s11, 0
    %13 = vsyncpa [#allocation4], 0
    %s14 = scalar_lea.sflag [#allocation4], 1
    %15 = vsyncpa %s14, 0
    loop: start=0, step=1, limit=4
    $region2: #{tpu_custom_call.1} parent=1 // loop_pre_header
      _
    $region3: #{tpu_custom_call.1} parent=1 // loop_header
      %s17 = sphi 0, %s21
      %p18 = scmp.ge.s32.totalorder %s17, 4
      %s24 = sphi 0, %s36
      %s25 = sphi 0, %s32
      %s26 = sphi 0, %s24
      %s27 = sphi 0, %s25
      %s28 = sphi 0, %s26
      %s29 = sphi 0, %s27
      %s41 = sphi 0, %s43
      %s44 = sphi 0, %s41
      %s45 = sphi 0, %s44
      %s61 = sphi 0, %s45
      %s69 = sphi 0, %s71
      %s72 = sphi 0, %s69
      %s73 = sphi 0, %s72
      %s89 = sphi 0, %s73
      %s95 = sphi 0, %s97
      %s98 = sphi 0, %s95
      %s99 = sphi 0, %s98
      %s115 = sphi 0, %s99
    $region4: #{tpu_custom_call.1} parent=1 // loop_header_branch
      %20 = sbr.rel (%p18) target = $region8
    $region5: #{tpu_custom_call.1} parent=1 // loop_body
      %s22 = ssub.s32 %s17, 1
      %s23 = ssub.s32 %s17, 2
      %s30 = sadd.s32 1, %s25
      %p31 = scmp.ge.s32.totalorder %s30, 1
      %s32 = scalar_select %p31, 0, %s30
      %s33 = sadd.s32 1, %s24
      %s34 = scalar_select %p31, %s33, %s24
      %p35 = scmp.ge.s32.totalorder %s34, 2
      %s36 = scalar_select %p35, 0, %s34
      %s37 = ssub.s32 %s24, %s36
      %s38 = ssub.s32 %s25, %s32
      %s39 = sor.u32 %s37, %s38
      %p40 = scmp.eq.s32.totalorder %s39, 0
      %s42 = sadd.s32 %s41, 1
      %s43 = scalar_select %p40, %s41, %s42
      %p46 = pneg %p40
      %p47 = scmp.eq.s32.totalorder %s17, 1
      %p48 = por %p46, %p47
      %p49 = scmp.ne.s32.totalorder %s41, %s44
      %p50 = scmp.eq.s32.totalorder %s17, 0
      %p51 = por %p49, %p50
      %p52 = scmp.ne.s32.totalorder %s41, %s44
      %p53 = scmp.eq.s32.totalorder %s22, 1
      %p54 = por %p52, %p53
      %p55 = scmp.ne.s32.totalorder %s44, %s45
      %p56 = scmp.eq.s32.totalorder %s22, 0
      %p57 = por %p55, %p56
      %p58 = scmp.ne.s32.totalorder %s44, %s45
      %p59 = scmp.eq.s32.totalorder %s23, 1
      %p60 = por %p58, %p59
      %p62 = scmp.ne.s32.totalorder %s45, %s61
      %p63 = scmp.eq.s32.totalorder %s23, 0
      %p64 = por %p62, %p63
      %s65 = ssub.s32 %s24, %s36
      %s66 = ssub.s32 %s25, %s32
      %s67 = sor.u32 %s65, %s66
      %p68 = scmp.eq.s32.totalorder %s67, 0
      %s70 = sadd.s32 %s69, 1
      %s71 = scalar_select %p68, %s69, %s70
      %p74 = pneg %p68
      %p75 = scmp.eq.s32.totalorder %s17, 1
      %p76 = por %p74, %p75
      %p77 = scmp.ne.s32.totalorder %s69, %s72
      %p78 = scmp.eq.s32.totalorder %s17, 0
      %p79 = por %p77, %p78
      %p80 = scmp.ne.s32.totalorder %s69, %s72
      %p81 = scmp.eq.s32.totalorder %s22, 1
      %p82 = por %p80, %p81
      %p83 = scmp.ne.s32.totalorder %s72, %s73
      %p84 = scmp.eq.s32.totalorder %s22, 0
      %p85 = por %p83, %p84
      %p86 = scmp.ne.s32.totalorder %s72, %s73
      %p87 = scmp.eq.s32.totalorder %s23, 1
      %p88 = por %p86, %p87
      %p90 = scmp.ne.s32.totalorder %s73, %s89
      %p91 = scmp.eq.s32.totalorder %s23, 0
      %p92 = por %p90, %p91
      %s93 = ssub.s32 %s24, %s36
      %p94 = scmp.eq.s32.totalorder %s93, 0
      %s96 = sadd.s32 %s95, 1
      %s97 = scalar_select %p94, %s95, %s96
      %p100 = pneg %p94
      %p101 = scmp.eq.s32.totalorder %s17, 1
      %p102 = por %p100, %p101
      %p103 = scmp.ne.s32.totalorder %s95, %s98
      %p104 = scmp.eq.s32.totalorder %s17, 0
      %p105 = por %p103, %p104
      %p106 = scmp.ne.s32.totalorder %s95, %s98
      %p107 = scmp.eq.s32.totalorder %s22, 1
      %p108 = por %p106, %p107
      %p109 = scmp.ne.s32.totalorder %s98, %s99
      %p110 = scmp.eq.s32.totalorder %s22, 0
      %p111 = por %p109, %p110
      %p112 = scmp.ne.s32.totalorder %s98, %s99
      %p113 = scmp.eq.s32.totalorder %s23, 1
      %p114 = por %p112, %p113
      %p116 = scmp.ne.s32.totalorder %s99, %s115
      %p117 = scmp.eq.s32.totalorder %s23, 0
      %p118 = por %p116, %p117
      %p119 = scmp.le.s32.totalorder 1, %s17
      %p120 = scmp.lt.s32.totalorder %s17, 3
      %p121 = pnand %p119, %p120
      %p122 = pneg %p121
      // Predicated region
      $region9: #{tpu_custom_call.1} parent=5 // pred_check
        _
      $region10: #{tpu_custom_call.1} parent=5 // pred_check_branch
        %124 = sbr.rel (%p121) target = $region12
      $region11: #{tpu_custom_call.1} parent=5 // pred_region
        %s125 = ssub.s32 %s17, 1
      $region12: #{tpu_custom_call.1} parent=5 // pred_fallthru
        _
      %p126 = scmp.lt.s32.totalorder %s17, 2
      // Predicated region
      $region13: #{tpu_custom_call.1} parent=5 // pred_check
        %p127 = pneg %p126
      $region14: #{tpu_custom_call.1} parent=5 // pred_check_branch
        %129 = sbr.rel (%p127) target = $region16
      $region15: #{tpu_custom_call.1} parent=5 // pred_region
        // Predicated region
        $region17: #{tpu_custom_call.1} parent=15 // pred_check
          %p130 = pneg %p51
        $region18: #{tpu_custom_call.1} parent=15 // pred_check_branch
          %132 = sbr.rel (%p130) target = $region20
        $region19: #{tpu_custom_call.1} parent=15 // pred_region
          %s133 = sand.u32 %s41, 1
          %s134 = scalar_lea.sflag [#allocation3], %s133
          %s135 = sand.u32 %s41, 1
          %s136 = smul.addr %s135, 8
          %s137 = scalar_lea.vmem [#allocation2], %s136
          %s138 = smul.u32 2, %s25
          %s140 = ssub.s32 128, 128
          %141 = vsyncadd %s134, %s140
          %s142 = smul.addr %s24, 2
          %s143 = sadd.s32 %s138, %s142
          %s144 = smul.addr %s143, 64
          %s145 = scalar_lea.hbm %s0, %s144
          %s147 = sshll.u32 %s137, 4
          %s148 = int_to_ptr.vmem [resolvable:$true] %s147
          %150 = dma.hbm_to_vmem [thread:$0]  %s145, 128, %s148, %s134
        $region20: #{tpu_custom_call.1} parent=15 // pred_fallthru
          _
        // Predicated region
        $region21: #{tpu_custom_call.1} parent=15 // pred_check
          %p151 = pneg %p79
        $region22: #{tpu_custom_call.1} parent=15 // pred_check_branch
          %153 = sbr.rel (%p151) target = $region24
        $region23: #{tpu_custom_call.1} parent=15 // pred_region
          %s154 = sand.u32 %s69, 1
          %s155 = scalar_lea.sflag [#allocation6], %s154
          %s156 = sand.u32 %s69, 1
          %s157 = smul.addr %s156, 2
          %s158 = scalar_lea.vmem [#allocation5], %s157
          %s159 = smul.u32 2, %s25
          %s161 = ssub.s32 32, 32
          %162 = vsyncadd %s155, %s161
          %s163 = smul.addr %s24, 2
          %s164 = sadd.s32 %s159, %s163
          %s165 = smul.addr %s164, 16
          %s166 = scalar_lea.hbm %s1, %s165
          %s168 = sshll.u32 %s158, 4
          %s169 = int_to_ptr.vmem [resolvable:$true] %s168
          %171 = dma.hbm_to_vmem [thread:$0]  %s166, 32, %s169, %s155
        $region24: #{tpu_custom_call.1} parent=15 // pred_fallthru
          _
      $region16: #{tpu_custom_call.1} parent=5 // pred_fallthru
        _
      %p172 = scmp.le.s32.totalorder 1, %s17
      %p173 = scmp.lt.s32.totalorder %s17, 3
      %p174 = pnand %p172, %p173
      %p175 = pneg %p174
      // Predicated region
      $region25: #{tpu_custom_call.1} parent=5 // pred_check
        _
      $region26: #{tpu_custom_call.1} parent=5 // pred_check_branch
        %177 = sbr.rel (%p174) target = $region28
      $region27: #{tpu_custom_call.1} parent=5 // pred_region
        %s178 = ssub.s32 %s17, 1
        %s179 = sand.u32 %s44, 1
        %s180 = scalar_lea.sflag [#allocation3], %s179
        %s181 = sand.u32 %s44, 1
        %s182 = smul.addr %s181, 8
        %s183 = scalar_lea.vmem [#allocation2], %s182
        // Predicated region
        $region29: #{tpu_custom_call.1} parent=27 // pred_check
          %p184 = pneg %p57
        $region30: #{tpu_custom_call.1} parent=27 // pred_check_branch
          %186 = sbr.rel (%p184) target = $region32
        $region31: #{tpu_custom_call.1} parent=27 // pred_region
          %187 = dma.done %s180, 128
        $region32: #{tpu_custom_call.1} parent=27 // pred_fallthru
          _
        %s188 = sand.u32 %s72, 1
        %s189 = scalar_lea.sflag [#allocation6], %s188
        %s190 = sand.u32 %s72, 1
        %s191 = smul.addr %s190, 2
        %s192 = scalar_lea.vmem [#allocation5], %s191
        // Predicated region
        $region33: #{tpu_custom_call.1} parent=27 // pred_check
          %p193 = pneg %p85
        $region34: #{tpu_custom_call.1} parent=27 // pred_check_branch
          %195 = sbr.rel (%p193) target = $region36
        $region35: #{tpu_custom_call.1} parent=27 // pred_region
          %196 = dma.done %s189, 32
        $region36: #{tpu_custom_call.1} parent=27 // pred_fallthru
          _
        %s197 = sand.u32 %s44, 1
        %s198 = scalar_lea.sflag [#allocation3], %s197
        %s199 = sand.u32 %s44, 1
        %s200 = smul.addr %s199, 8
        %s201 = scalar_lea.vmem [#allocation2], %s200
        %p202 = pneg %p57
        %p203 = pneg %p54
        %s204 = sand.u32 %s72, 1
        %s205 = scalar_lea.sflag [#allocation6], %s204
        %s206 = sand.u32 %s72, 1
        %s207 = smul.addr %s206, 2
        %s208 = scalar_lea.vmem [#allocation5], %s207
        %p209 = pneg %p85
        %p210 = pneg %p82
        %p211 = pneg %p111
        %p212 = pneg %p108
        %s213 = sand.u32 %s98, 1
        %s214 = scalar_lea.sflag [#allocation4], %s213
        %s215 = sand.u32 %s98, 1
        %s216 = smul.addr %s215, 4
        %s217 = scalar_lea.vmem [#allocation7], %s216
        %s218 = smul.u32 2, %s27
        %s219 = smul.u32 2, %s27
        %p220 = scmp.eq.s32.totalorder %s27, 0
        // Predicated region
        $region37: #{tpu_custom_call.1} parent=27 // pred_check
          %p221 = pneg %p220
        $region38: #{tpu_custom_call.1} parent=27 // pred_check_branch
          %223 = sbr.rel (%p221) target = $region40
        $region39: #{tpu_custom_call.1} parent=27 // pred_region
          %224 = vst [vmem:[%s217] sm:$0xf] 0.0
        $region40: #{tpu_custom_call.1} parent=27 // pred_fallthru
          _
        %v225 = vld [vmem:[%s183] sm:$0xff]
        %v226 = vld [vmem:[%s192] sm:$0x3]
        %vm227 = vcmp.ne.s32.totalorder %v226, 255
        %v228 = vsel %vm227, 1, 0
        %v229 = vcvt.s32.f32 %v228
        %v231 = vcombine.high %v225, %v225
        %vm233 = vcmask 1043456
        %v234 = vsel %vm233, %v225, -inf
        %v235 = vrot.slane %v234, 4
        %v236 = vmax.f32 %v234, %v235
        %v237 = vrot.slane %v236, 2
        %v238 = vmax.f32 %v236, %v237
        %v239 = vrot.slane %v238, 1
        %v240 = vmax.f32 %v238, %v239
        %v241 = vsel %vm233, %v231, -inf
        %v242 = vrot.slane %v241, 4
        %v243 = vmax.f32 %v241, %v242
        %v244 = vrot.slane %v243, 2
        %v245 = vmax.f32 %v243, %v244
        %v246 = vrot.slane %v245, 1
        %v247 = vmax.f32 %v245, %v246
        %v250 = vcombine.low %v240, %v247
        %v252 = vsub.f32 %v225, %v250
        %v253 = vmul.f32 %v252, 1.442695
        %v254 = vpow.pop %v253
        %v256 = vcombine.high %v254, %v254
        %v258 = vsel %vm233, %v254, 0.0
        %v259 = vrot.slane %v258, 4
        %v260 = vadd.f32 %v258, %v259
        %v261 = vrot.slane %v260, 2
        %v262 = vadd.f32 %v260, %v261
        %v263 = vrot.slane %v262, 1
        %v264 = vadd.f32 %v262, %v263
        %v265 = vsel %vm233, %v256, 0.0
        %v266 = vrot.slane %v265, 4
        %v267 = vadd.f32 %v265, %v266
        %v268 = vrot.slane %v267, 2
        %v269 = vadd.f32 %v267, %v268
        %v270 = vrot.slane %v269, 1
        %v271 = vadd.f32 %v269, %v270
        %v272 = vrcp.pop %v264
        %v273 = vrcp.pop %v271
        %v274 = vlog2.pop %v264
        %v275 = vmul.f32 %v274, 0.6931472
        %v276 = vlog2.pop %v271
        %v277 = vmul.f32 %v276, 0.6931472
        %v278 = vadd.f32 %v240, %v275
        %v279 = vadd.f32 %v247, %v277
        %v282 = vcombine.low %v272, %v273
        %v284 = vmul.f32 %v254, %v282
        %v285 = vlaneseq
        %v286 = vshrl.u32 %v285, 7
        %v287 = vlaneseq
        %v288 = vshrl.u32 %v287, 7
        %v289 = vsub.s32 0, %v288
        %v290 = vrot.slane %v226, %v289
        %v291 = vlaneseq
        %v292 = vshrl.u32 %v291, 7
        %v293 = vsub.s32 1, %v292
        %v294 = vrot.slane %v226, %v293
        %vm295 = vcmp.eq.s32.totalorder %v286, %v290
        %vm296 = vcmp.eq.s32.totalorder %v286, %v294
        %v297 = vlaneseq
        %v298 = vshrl.u32 %v297, 7
        %v299 = vsub.s32 0, %v298
        %v300 = vrot.slane %v228, %v299
        %v301 = vlaneseq
        %v302 = vshrl.u32 %v301, 7
        %v303 = vsub.s32 1, %v302
        %v304 = vrot.slane %v228, %v303
        %vm305 = vcmp.eq.s32.totalorder %v300, 1
        %vm306 = vcmp.eq.s32.totalorder %v304, 1
        %vm307 = vmand %vm295, %vm305
        %vm308 = vmand %vm296, %vm306
        %v309 = vsel %vm307, 1.0, 0.0
        %v310 = vsel %vm308, 1.0, 0.0
        %v313 = vcombine.low %v309, %v310
        %v315 = vmul.f32 %v225, %v313
        %v317 = vcombine.high %v315, %v315
        %v319 = vsel %vm233, %v315, 0.0
        %v320 = vrot.slane %v319, 4
        %v321 = vadd.f32 %v319, %v320
        %v322 = vrot.slane %v321, 2
        %v323 = vadd.f32 %v321, %v322
        %v324 = vrot.slane %v323, 1
        %v325 = vadd.f32 %v323, %v324
        %v326 = vsel %vm233, %v317, 0.0
        %v327 = vrot.slane %v326, 4
        %v328 = vadd.f32 %v326, %v327
        %v329 = vrot.slane %v328, 2
        %v330 = vadd.f32 %v328, %v329
        %v331 = vrot.slane %v330, 1
        %v332 = vadd.f32 %v330, %v331
        %v333 = vsel %vm233, %v225, 0.0
        %v334 = vrot.slane %v333, 4
        %v335 = vadd.f32 %v333, %v334
        %v336 = vrot.slane %v335, 2
        %v337 = vadd.f32 %v335, %v336
        %v338 = vrot.slane %v337, 1
        %v339 = vadd.f32 %v337, %v338
        %v340 = vsel %vm233, %v231, 0.0
        %v341 = vrot.slane %v340, 4
        %v342 = vadd.f32 %v340, %v341
        %v343 = vrot.slane %v342, 2
        %v344 = vadd.f32 %v342, %v343
        %v345 = vrot.slane %v344, 1
        %v346 = vadd.f32 %v344, %v345
        %v348 = vlaneseq
        %v349 = vshrl.u32 %v348, 7
        %v350 = vsub.s32 0, %v349
        %v351 = vrot.slane %v229, %v350
        %v352 = vlaneseq
        %v353 = vshrl.u32 %v352, 7
        %v354 = vsub.s32 1, %v353
        %v355 = vrot.slane %v229, %v354
        %v358 = vmul.f32 %v278, %v351
        %v359 = vmul.f32 %v279, %v355
        %v360 = vsub.f32 %v358, %v325
        %v361 = vsub.f32 %v359, %v332
        %vm362 = vcmask 1040384
        %v363 = vsel %vm362, %v360, 0.0
        %v364 = vsel %vm362, %v361, 0.0
        %v365 = vadd.f32 %v363, %v364
        %366 = vadd.xlane.f32.xlu0 %v365
        %v367 = vpop.xlane.xlu0 %366
        %v368 = vrot.slane %v367, 4
        %v369 = vadd.f32 %v367, %v368
        %v370 = vrot.slane %v369, 2
        %v371 = vadd.f32 %v369, %v370
        %v372 = vrot.slane %v371, 1
        %v373 = vadd.f32 %v371, %v372
        %s374 = vtos %v373
        %v375 = vmul.f32 %v278, 4.0
        %v376 = vmul.f32 %v279, 4.0
        %v377 = vsub.f32 %v375, %v339
        %v378 = vsub.f32 %v376, %v346
        %v379 = vmul.f32 %v377, %v351
        %v380 = vmul.f32 %v378, %v355
        %v381 = vsel %vm362, %v379, 0.0
        %v382 = vsel %vm362, %v380, 0.0
        %v383 = vadd.f32 %v381, %v382
        %384 = vadd.xlane.f32.xlu0 %v383
        %v385 = vpop.xlane.xlu0 %384
        %v386 = vrot.slane %v385, 4
        %v387 = vadd.f32 %v385, %v386
        %v388 = vrot.slane %v387, 2
        %v389 = vadd.f32 %v387, %v388
        %v390 = vrot.slane %v389, 1
        %v391 = vadd.f32 %v389, %v390
        %s392 = vtos %v391
        %v393 = vmul.f32 %v284, %v313
        %v395 = vcombine.high %v393, %v393
        %v397 = vsel %vm233, %v393, 0.0
        %v398 = vsel %vm233, %v395, 0.0
        %v399 = vadd.f32 %v397, %v398
        %400 = vadd.xlane.f32.xlu0 %v399
        %v401 = vpop.xlane.xlu0 %400
        %v402 = vcombine.low %v351, %v355
        %v404 = vmul.f32 %v284, %v402
        %v406 = vcombine.high %v404, %v404
        %v408 = vsel %vm233, %v404, 0.0
        %v409 = vsel %vm233, %v406, 0.0
        %v410 = vadd.f32 %v408, %v409
        %411 = vadd.xlane.f32.xlu0 %v410
        %v412 = vpop.xlane.xlu0 %411
        %v413 = vsel %vm233, %v309, 0.0
        %v414 = vsel %vm233, %v310, 0.0
        %v415 = vadd.f32 %v413, %v414
        %416 = vadd.xlane.f32.xlu0 %v415
        %v417 = vpop.xlane.xlu0 %416
        %v418 = vadd.f32 %v412, %v417
        %v419 = vlaneseq
        %v420 = vand.u32 %v419, 127
        %vm421 = vcmp.eq.s32.totalorder %v420, 0
        %v422 = vsel %vm421, %v401, 0.0
        %vm423 = vcmp.eq.s32.totalorder %v420, 1
        %v424 = vsel %vm423, %v418, 0.0
        %v425 = vadd.f32 %v422, %v424
        %vm426 = vcmp.eq.s32.totalorder %v420, 2
        %v427 = vsel %vm426, %v417, 0.0
        %v428 = vadd.f32 %v425, %v427
        %vm429 = vcmp.eq.s32.totalorder %v286, 0
        %vm430 = vcmp.eq.s32.totalorder %v420, 3
        %vm431 = vmand %vm429, %vm430
        %v432 = vstv %s374
        %v433 = vsel %vm431, %v432, 0.0
        %v434 = vadd.f32 %v428, %v433
        %vm435 = vcmp.eq.s32.totalorder %v420, 4
        %vm436 = vmand %vm429, %vm435
        %v437 = vstv %s392
        %v438 = vsel %vm436, %v437, 0.0
        %v439 = vadd.f32 %v434, %v438
        %v440 = vld [vmem:[%s217] sm:$0xf]
        %v441 = vadd.f32 %v440, %v439
        %442 = vst [vmem:[%s217] sm:$0xf] %v441
        %s443 = sand.u32 %s98, 1
        %s444 = scalar_lea.sflag [#allocation4], %s443
        %s445 = sand.u32 %s98, 1
        %s446 = smul.addr %s445, 4
        %s447 = scalar_lea.vmem [#allocation7], %s446
        // Predicated region
        $region41: #{tpu_custom_call.1} parent=27 // pred_check
          %p448 = pneg %p108
        $region42: #{tpu_custom_call.1} parent=27 // pred_check_branch
          %450 = sbr.rel (%p448) target = $region44
        $region43: #{tpu_custom_call.1} parent=27 // pred_region
          %s452 = ssub.s32 64, 64
          %453 = vsyncadd %s444, %s452
          %s454 = smul.addr %s26, 64
          %s455 = scalar_lea.hbm %s2, %s454
          %s457 = sshll.u32 %s447, 4
          %s458 = int_to_ptr.vmem [resolvable:$true] %s457
          %460 = dma.vmem_to_hbm [thread:$0]  %s458, 64, %s455, %s444
        $region44: #{tpu_custom_call.1} parent=27 // pred_fallthru
          _
      $region28: #{tpu_custom_call.1} parent=5 // pred_fallthru
        _
      %p461 = scmp.le.s32.totalorder 2, %s17
      // Predicated region
      $region45: #{tpu_custom_call.1} parent=5 // pred_check
        %p462 = pneg %p461
      $region46: #{tpu_custom_call.1} parent=5 // pred_check_branch
        %464 = sbr.rel (%p462) target = $region48
      $region47: #{tpu_custom_call.1} parent=5 // pred_region
        %s465 = ssub.s32 %s17, 2
        // Predicated region
        $region49: #{tpu_custom_call.1} parent=47 // pred_check
          %p466 = pneg %p114
        $region50: #{tpu_custom_call.1} parent=47 // pred_check_branch
          %468 = sbr.rel (%p466) target = $region52
        $region51: #{tpu_custom_call.1} parent=47 // pred_region
          %s469 = sand.u32 %s99, 1
          %s470 = scalar_lea.sflag [#allocation4], %s469
          %s471 = sand.u32 %s99, 1
          %s472 = smul.addr %s471, 4
          %s473 = scalar_lea.vmem [#allocation7], %s472
          %474 = dma.done %s470, 64
        $region52: #{tpu_custom_call.1} parent=47 // pred_fallthru
          _
      $region48: #{tpu_custom_call.1} parent=5 // pred_fallthru
        _
    $region6: #{tpu_custom_call.1} parent=1 // loop_footer
      %s21 = sadd.s32 1, %s17
    $region7: #{tpu_custom_call.1} parent=1 // loop_footer_branch
      %16 = sbr.rel target = $region3
    $region8: #{tpu_custom_call.1} parent=1 // loop_exit
      _
    %475 = vsyncpa [#allocation3], 1
    %s476 = scalar_lea.sflag [#allocation3], 1
    %477 = vsyncpa %s476, 1
    %478 = vsyncpa [#allocation6], 1
    %s479 = scalar_lea.sflag [#allocation6], 1
    %480 = vsyncpa %s479, 1
    %481 = vsyncpa [#allocation4], 1
    %s482 = scalar_lea.sflag [#allocation4], 1
    %483 = vsyncpa %s482, 1

</llo_original>
